<compile_context>
chip_gen: v7x
topology: tpu7x:2x2x1
jax: 0.10.0
libtpu: 0.0.40
codegen_flags: <defaults>
</compile_context>

<pallas_src>
import jax
import jax.numpy as jnp
from jax.experimental import pallas as pl
from jax.experimental.pallas import tpu as pltpu

BN_EPS = 1e-5


def _policy_kernel(x_ref, w1_ref, gamma_ref, beta_ref, w2_ref, b2_ref, o_ref):
    """Fused conv1x1 + BatchNorm2d(train) + ReLU + Linear + Softmax.

    x_ref:     (N, Cin, HW)       input in native NCHW layout (HW = H*W)
    w1_ref:    (Cout, Cin)        conv weight (PyTorch (out,in,1,1) squeezed)
    gamma_ref: (Cout, 1)          BN scale
    beta_ref:  (Cout, 1)          BN shift
    w2_ref:    (Cout*HW, Fout)    linear weight (stored transposed vs. torch)
    b2_ref:    (1, Fout)          linear bias
    o_ref:     (N, Fout)          softmax probabilities
    """
    n_batch, _, hw = x_ref.shape
    cout = w1_ref.shape[0]

    # ---- 1x1 conv == per-sample channel matmul; result stays in vregs -------
    w1 = w1_ref[...]
    y = jnp.stack(
        [jnp.dot(w1, x_ref[n], preferred_element_type=jnp.float32)
         for n in range(n_batch)],                 # N is tiny; static unroll
        axis=0)                                    # (N, Cout, HW)

    # ---- BatchNorm2d: training-mode batch stats over (N, H, W) per channel --
    # TODO(synk): a PyTorch model in eval() would use running_mean/running_var;
    # we implement train-mode batch statistics (module default after __init__).
    inv_count = 1.0 / float(n_batch * hw)
    mean = jnp.sum(y, axis=(0, 2), keepdims=True) * inv_count      # (1, Cout, 1)
    d = y - mean
    var = jnp.sum(d * d, axis=(0, 2), keepdims=True) * inv_count   # (1, Cout, 1)
    scale = jax.lax.rsqrt(var + BN_EPS) * gamma_ref[...]
    y_act = jnp.maximum(d * scale + beta_ref[...], 0.0)            # (N, Cout, HW)

    # ---- Linear: single K = Cout*HW contraction on the MXU ------------------
    feat = y_act.reshape(n_batch, cout * hw)       # NCHW flatten order
    logits = jnp.dot(feat, w2_ref[...],
                     preferred_element_type=jnp.float32) + b2_ref[...]

    # ---- Softmax (numerically stable; exact divide so rows sum to 1) --------
    m = jnp.max(logits, axis=-1, keepdims=True)
    e = jnp.exp(logits - m)
    o_ref[...] = e / jnp.sum(e, axis=-1, keepdims=True)


def policy_net_forward(x_nchw, params):
    """PolicyNet forward: Conv2d(128,4,1,1,0,bias=False)+BN+ReLU -> flatten
    -> Linear(4*B*B, B*B) -> Softmax, as one fused Pallas call."""
    w1, gamma, beta, w2, b2 = (params[k] for k in ("w1", "gamma", "beta", "w2", "b2"))
    N, Cin, H, W = x_nchw.shape
    HW = H * W
    Cout = w1.shape[0]
    Fout = w2.shape[1]

    # Free views only (no relayout copies):
    x3 = x_nchw.reshape(N, Cin, HW)              # native channel-major layout
    gamma_c = gamma.reshape(Cout, 1)
    beta_c = beta.reshape(Cout, 1)
    b2r = b2.reshape(1, Fout)

    # TODO(synk): the literal PyTorch Sequential feeds the 4-D conv output straight
    # into nn.Linear (shape mismatch at runtime); we implement the intended NCHW
    # flatten, so w2's Fin ordering assumes channel-major flattening.
    # NOTE: exact BN batch statistics require the whole batch in one (gridless)
    # block.  If N grows, add a grid over N with
    # compiler_params=pltpu.CompilerParams(dimension_semantics=("parallel",)) and a
    # two-pass / carried-accumulator BN so both v7x TensorCores get work and the
    # per-block VMEM stays inside v7x's 64 MiB.
    vmem = pl.BlockSpec(memory_space=pltpu.MemorySpace.VMEM)
    return pl.pallas_call(
        _policy_kernel,
        out_shape=jax.ShapeDtypeStruct((N, Fout), jnp.float32),
        in_specs=[vmem] * 6,
        out_specs=vmem,
    )(x3, w1, gamma_c, beta_c, w2, b2r)


# --------------------------------------------------------------- reference ---
def reference_forward(x, params):
    w1, gamma, beta, w2, b2 = (params[k] for k in ("w1", "gamma", "beta", "w2", "b2"))
    N = x.shape[0]
    y = jnp.einsum("nchw,oc->nohw", x, w1)
    mean = jnp.mean(y, axis=(0, 2, 3), keepdims=True)
    var = jnp.mean((y - mean) ** 2, axis=(0, 2, 3), keepdims=True)
    y = (y - mean) * jax.lax.rsqrt(var + BN_EPS)
    y = y * gamma.reshape(1, -1, 1, 1) + beta.reshape(1, -1, 1, 1)
    y = jnp.maximum(y, 0.0)
    feat = y.reshape(N, -1)
    logits = feat @ w2 + b2
    return jax.nn.softmax(logits, axis=-1)


if __name__ == "__main__":
    boardsize = 8
    N, Cin, Cout = 2, 128, 4
    Fin, Fout = Cout * boardsize * boardsize, boardsize * boardsize

    key = jax.random.PRNGKey(0)
    k1, k2, k3, k4 = jax.random.split(key, 4)

    # Deterministic synthetic parameters (shapes follow the module's __init__):
    #   Conv2d(128, 4, 1, 1, 0, bias=False): weight (4,128,1,1) -> (4,128)
    #   BatchNorm2d(4): gamma=1, beta=0 (PyTorch default init)
    #   Linear(4*B*B, B*B): weight stored transposed as (Fin, Fout), bias (Fout,)
    x = jax.random.normal(k1, (N, Cin, boardsize, boardsize), jnp.float32)
    w1 = jax.random.normal(k2, (Cout, Cin), jnp.float32) / jnp.sqrt(float(Cin))
    gamma = jnp.ones((Cout,), jnp.float32)
    beta = jnp.zeros((Cout,), jnp.float32)
    w2 = jax.random.normal(k3, (Fin, Fout), jnp.float32) / jnp.sqrt(float(Fin))
    b2 = jax.random.normal(k4, (Fout,), jnp.float32) * 0.01
    params = dict(w1=w1, gamma=gamma, beta=beta, w2=w2, b2=b2)

    out = jax.block_until_ready(policy_net_forward(x, params))
    ref = reference_forward(x, params)

    assert out.shape == (N, boardsize * boardsize), out.shape
    assert out.dtype == jnp.float32
    assert jnp.allclose(out, ref, atol=1e-3, rtol=1e-3), "mismatch vs reference"
    assert jnp.allclose(jnp.sum(out, axis=-1), 1.0, atol=1e-4), "softmax rows != 1"

    print("KERNEL_OK")
</pallas_src>

<mosaic_0001>
module attributes {stable_mosaic.version = 11 : i64} {
  func.func @_policy_kernel(%arg0: memref<2x128x64xf32, #tpu.memory_space<vmem>>, %arg1: memref<4x128xf32, #tpu.memory_space<vmem>>, %arg2: memref<4x1xf32, #tpu.memory_space<vmem>>, %arg3: memref<4x1xf32, #tpu.memory_space<vmem>>, %arg4: memref<256x64xf32, #tpu.memory_space<vmem>>, %arg5: memref<1x64xf32, #tpu.memory_space<vmem>>, %arg6: memref<2x64xf32, #tpu.memory_space<vmem>>) attributes {dimension_semantics = [], scalar_prefetch = 0 : i64, scratch_operands = 0 : i64, tpu.core_type = #tpu.core_type<tc>} {
    %c0 = arith.constant 0 : index
    %c0_0 = arith.constant 0 : index
    %0 = vector.load %arg1[%c0, %c0_0] : memref<4x128xf32, #tpu.memory_space<vmem>>, vector<4x128xf32>
    %c0_1 = arith.constant 0 : index
    %c0_2 = arith.constant 0 : index
    %c0_3 = arith.constant 0 : index
    %1 = vector.load %arg0[%c0_1, %c0_2, %c0_3] : memref<2x128x64xf32, #tpu.memory_space<vmem>>, vector<1x128x64xf32>
    %2 = vector.shape_cast %1 : vector<1x128x64xf32> to vector<128x64xf32>
    %cst = arith.constant dense<0.000000e+00> : vector<4x64xf32>
    %3 = tpu.matmul %0, %2, %cst {dimension_numbers = #tpu.dot_dimension_numbers<[1], [0], [0], [1], [0, 0, 1, 1], [], []>} : vector<4x128xf32>, vector<128x64xf32>, vector<4x64xf32> -> vector<4x64xf32>
    %c1 = arith.constant 1 : index
    %c0_4 = arith.constant 0 : index
    %c0_5 = arith.constant 0 : index
    %4 = vector.load %arg0[%c1, %c0_4, %c0_5] : memref<2x128x64xf32, #tpu.memory_space<vmem>>, vector<1x128x64xf32>
    %5 = vector.shape_cast %4 : vector<1x128x64xf32> to vector<128x64xf32>
    %cst_6 = arith.constant dense<0.000000e+00> : vector<4x64xf32>
    %6 = tpu.matmul %0, %5, %cst_6 {dimension_numbers = #tpu.dot_dimension_numbers<[1], [0], [0], [1], [0, 0, 1, 1], [], []>} : vector<4x128xf32>, vector<128x64xf32>, vector<4x64xf32> -> vector<4x64xf32>
    %7 = vector.shape_cast %3 : vector<4x64xf32> to vector<1x4x64xf32>
    %8 = vector.shape_cast %6 : vector<4x64xf32> to vector<1x4x64xf32>
    %9 = tpu.concatenate %7, %8 in 0 : vector<1x4x64xf32>, vector<1x4x64xf32> -> vector<2x4x64xf32>
    %cst_7 = arith.constant dense<0.000000e+00> : vector<4xf32>
    %10 = vector.multi_reduction <add>, %9, %cst_7 [0, 2] : vector<2x4x64xf32> to vector<4xf32>
    %11 = vector.shape_cast %10 : vector<4xf32> to vector<1x4x1xf32>
    %cst_8 = arith.constant 7.812500e-03 : f32
    %12 = vector.broadcast %cst_8 : f32 to vector<1x4x1xf32>
    %13 = arith.mulf %11, %12 : vector<1x4x1xf32>
    %14 = vector.broadcast %13 : vector<1x4x1xf32> to vector<2x4x64xf32>
    %15 = arith.subf %9, %14 : vector<2x4x64xf32>
    %16 = arith.mulf %15, %15 : vector<2x4x64xf32>
    %cst_9 = arith.constant dense<0.000000e+00> : vector<4xf32>
    %17 = vector.multi_reduction <add>, %16, %cst_9 [0, 2] : vector<2x4x64xf32> to vector<4xf32>
    %18 = vector.shape_cast %17 : vector<4xf32> to vector<1x4x1xf32>
    %cst_10 = arith.constant 7.812500e-03 : f32
    %19 = vector.broadcast %cst_10 : f32 to vector<1x4x1xf32>
    %20 = arith.mulf %18, %19 : vector<1x4x1xf32>
    %cst_11 = arith.constant 9.99999974E-6 : f32
    %21 = vector.broadcast %cst_11 : f32 to vector<1x4x1xf32>
    %22 = arith.addf %20, %21 : vector<1x4x1xf32>
    %23 = math.rsqrt %22 : vector<1x4x1xf32>
    %c0_12 = arith.constant 0 : index
    %c0_13 = arith.constant 0 : index
    %24 = vector.load %arg2[%c0_12, %c0_13] : memref<4x1xf32, #tpu.memory_space<vmem>>, vector<4x1xf32>
    %25 = vector.shape_cast %24 : vector<4x1xf32> to vector<1x4x1xf32>
    %26 = arith.mulf %23, %25 : vector<1x4x1xf32>
    %27 = vector.broadcast %26 : vector<1x4x1xf32> to vector<2x4x64xf32>
    %28 = arith.mulf %15, %27 : vector<2x4x64xf32>
    %c0_14 = arith.constant 0 : index
    %c0_15 = arith.constant 0 : index
    %29 = vector.load %arg3[%c0_14, %c0_15] : memref<4x1xf32, #tpu.memory_space<vmem>>, vector<4x1xf32>
    %30 = vector.shape_cast %29 : vector<4x1xf32> to vector<1x4x1xf32>
    %31 = vector.broadcast %30 : vector<1x4x1xf32> to vector<2x4x64xf32>
    %32 = arith.addf %28, %31 : vector<2x4x64xf32>
    %cst_16 = arith.constant 0.000000e+00 : f32
    %33 = vector.broadcast %cst_16 : f32 to vector<2x4x64xf32>
    %34 = arith.maximumf %32, %33 : vector<2x4x64xf32>
    %35 = vector.shape_cast %34 : vector<2x4x64xf32> to vector<2x256xf32>
    %c0_17 = arith.constant 0 : index
    %c0_18 = arith.constant 0 : index
    %36 = vector.load %arg4[%c0_17, %c0_18] : memref<256x64xf32, #tpu.memory_space<vmem>>, vector<256x64xf32>
    %cst_19 = arith.constant dense<0.000000e+00> : vector<2x64xf32>
    %37 = tpu.matmul %35, %36, %cst_19 {dimension_numbers = #tpu.dot_dimension_numbers<[1], [0], [0], [1], [0, 0, 1, 1], [], []>} : vector<2x256xf32>, vector<256x64xf32>, vector<2x64xf32> -> vector<2x64xf32>
    %c0_20 = arith.constant 0 : index
    %c0_21 = arith.constant 0 : index
    %38 = vector.load %arg5[%c0_20, %c0_21] : memref<1x64xf32, #tpu.memory_space<vmem>>, vector<1x64xf32>
    %39 = vector.broadcast %38 : vector<1x64xf32> to vector<2x64xf32>
    %40 = arith.addf %37, %39 : vector<2x64xf32>
    %cst_22 = arith.constant dense<0xFF800000> : vector<2xf32>
    %41 = vector.multi_reduction <maximumf>, %40, %cst_22 [1] : vector<2x64xf32> to vector<2xf32>
    %42 = vector.shape_cast %41 : vector<2xf32> to vector<2x1xf32>
    %43 = vector.broadcast %42 : vector<2x1xf32> to vector<2x64xf32>
    %44 = arith.subf %40, %43 : vector<2x64xf32>
    %45 = math.exp %44 : vector<2x64xf32>
    %cst_23 = arith.constant dense<0.000000e+00> : vector<2xf32>
    %46 = vector.multi_reduction <add>, %45, %cst_23 [1] : vector<2x64xf32> to vector<2xf32>
    %47 = vector.shape_cast %46 : vector<2xf32> to vector<2x1xf32>
    %48 = vector.broadcast %47 : vector<2x1xf32> to vector<2x64xf32>
    %49 = arith.divf %45, %48 : vector<2x64xf32>
    %c0_24 = arith.constant 0 : index
    %c0_25 = arith.constant 0 : index
    %50 = vector.load %arg6[%c0_24, %c0_25] : memref<2x64xf32, #tpu.memory_space<vmem>>, vector<2x64xf32>
    tpu.vector_store %arg6[%c0_24, %c0_25], %49 {strides = array<i32>} : memref<2x64xf32, #tpu.memory_space<vmem>>, vector<2x64xf32>,
    return
  }
}

</mosaic_0001>

<llo_original>
// kernel: tpu_custom_call.1
$region0: #{tpu_custom_call.1}
  #allocation0 [shape = 'u32[]', space=smem, size = 0x4, offset = 0x4, fixed_abs, tag = 'smem constant byte address 0x4 - core index']
  #allocation1 [shape = 'u32[144,128]{1,0:T(1,128)}', space=vmem, size = 0x12000, scoped, tag = 'internal scratch']
  %s0 = inlined_call_operand.vmem [shape: f32[2,128,64], index: 0, kind: input, shape index: {}]
  %s1 = inlined_call_operand.vmem [shape: f32[4,128], index: 1, kind: input, shape index: {}]
  %s2 = inlined_call_operand.vmem [shape: f32[4,1], index: 2, kind: input, shape index: {}]
  %s3 = inlined_call_operand.vmem [shape: f32[4,1], index: 3, kind: input, shape index: {}]
  %s4 = inlined_call_operand.vmem [shape: f32[256,64], index: 4, kind: input, shape index: {}]
  %s5 = inlined_call_operand.vmem [shape: f32[1,64], index: 5, kind: input, shape index: {}]
  %s6 = inlined_call_operand.hbm [shape: f32[2,64], index: 6, kind: output, shape index: {}]
  %s7 = sld [smem:[#allocation0]]
  $region34: #{tpu_custom_call.1} parent=0
    _
  %s9 = ssub.s32 1, %s7
  %s10 = scalar_select 0, %s9, %s7
  $region1: #{tpu_custom_call.1} parent=0
    #allocation2 [shape = 'u8[1024]{0}', space=vmem, size = 0x400, scoped, tag = 'output window, operand 0, single buffered']
    #allocation3 [shape = 's32[1]{0}', space=sflag, size = 0x4, scoped, tag = 'scoped memory for tpu_custom_call.1']
    %11 = vsyncpa [#allocation3], 0
    // Predicated region
    $region2: #{tpu_custom_call.1} parent=1 // pred_check
      _
    $region3: #{tpu_custom_call.1} parent=1 // pred_check_branch
      %13 = sbr.rel (0) target = $region5
    $region4: #{tpu_custom_call.1} parent=1 // pred_region
      _
    $region5: #{tpu_custom_call.1} parent=1 // pred_fallthru
      _
    // Predicated region
    $region6: #{tpu_custom_call.1} parent=1 // pred_check
      _
    $region7: #{tpu_custom_call.1} parent=1 // pred_check_branch
      %15 = sbr.rel (0) target = $region9
    $region8: #{tpu_custom_call.1} parent=1 // pred_region
      _
    $region9: #{tpu_custom_call.1} parent=1 // pred_fallthru
      _
    // Predicated region
    $region10: #{tpu_custom_call.1} parent=1 // pred_check
      _
    $region11: #{tpu_custom_call.1} parent=1 // pred_check_branch
      %17 = sbr.rel (0) target = $region13
    $region12: #{tpu_custom_call.1} parent=1 // pred_region
      _
    $region13: #{tpu_custom_call.1} parent=1 // pred_fallthru
      _
    // Predicated region
    $region14: #{tpu_custom_call.1} parent=1 // pred_check
      _
    $region15: #{tpu_custom_call.1} parent=1 // pred_check_branch
      %19 = sbr.rel (0) target = $region17
    $region16: #{tpu_custom_call.1} parent=1 // pred_region
      _
    $region17: #{tpu_custom_call.1} parent=1 // pred_fallthru
      _
    // Predicated region
    $region18: #{tpu_custom_call.1} parent=1 // pred_check
      _
    $region19: #{tpu_custom_call.1} parent=1 // pred_check_branch
      %21 = sbr.rel (0) target = $region21
    $region20: #{tpu_custom_call.1} parent=1 // pred_region
      _
    $region21: #{tpu_custom_call.1} parent=1 // pred_fallthru
      _
    // Predicated region
    $region22: #{tpu_custom_call.1} parent=1 // pred_check
      _
    $region23: #{tpu_custom_call.1} parent=1 // pred_check_branch
      %23 = sbr.rel (0) target = $region25
    $region24: #{tpu_custom_call.1} parent=1 // pred_region
      _
    $region25: #{tpu_custom_call.1} parent=1 // pred_fallthru
      _
    %v24 = vld [vmem:[%s1] sm:$0xf]
    %v25 = vld [vmem:[%s0] sm:$0xff]
    %v26 = vld [vmem:[%s0 + $0x8] sm:$0xff]
    %v27 = vld [vmem:[%s0 + $0x10] sm:$0xff]
    %v28 = vld [vmem:[%s0 + $0x18] sm:$0xff]
    %v29 = vld [vmem:[%s0 + $0x20] sm:$0xff]
    %v30 = vld [vmem:[%s0 + $0x28] sm:$0xff]
    %v31 = vld [vmem:[%s0 + $0x30] sm:$0xff]
    %v32 = vld [vmem:[%s0 + $0x38] sm:$0xff]
    %v33 = vld [vmem:[%s0 + $0x40] sm:$0xff]
    %v34 = vld [vmem:[%s0 + $0x48] sm:$0xff]
    %v35 = vld [vmem:[%s0 + $0x50] sm:$0xff]
    %v36 = vld [vmem:[%s0 + $0x58] sm:$0xff]
    %v37 = vld [vmem:[%s0 + $0x60] sm:$0xff]
    %v38 = vld [vmem:[%s0 + $0x68] sm:$0xff]
    %v39 = vld [vmem:[%s0 + $0x70] sm:$0xff]
    %v40 = vld [vmem:[%s0 + $0x78] sm:$0xff]
    %41 = vmatprep.subr.mxu0 0.0
    %42 = vmatpush1.msra.mxu0 %v25
    %43 = vmatprep.subr.mxu0 0.0
    %44 = vmatpush1.msra.mxu0 %v26
    %45 = vmatprep.subr.mxu0 0.0
    %46 = vmatpush1.msra.mxu0 %v27
    %47 = vmatprep.subr.mxu0 0.0
    %48 = vmatpush1.msra.mxu0 %v28
    %49 = vmatprep.subr.mxu0 0.0
    %50 = vmatpush1.msra.mxu0 %v29
    %51 = vmatprep.subr.mxu0 0.0
    %52 = vmatpush1.msra.mxu0 %v30
    %53 = vmatprep.subr.mxu0 0.0
    %54 = vmatpush1.msra.mxu0 %v31
    %55 = vmatprep.subr.mxu0 0.0
    %56 = vmatpush1.msra.mxu0 %v32
    %57 = vmatprep.subr.mxu0 0.0
    %58 = vmatpush1.msra.mxu0 %v33
    %59 = vmatprep.subr.mxu0 0.0
    %60 = vmatpush1.msra.mxu0 %v34
    %61 = vmatprep.subr.mxu0 0.0
    %62 = vmatpush1.msra.mxu0 %v35
    %63 = vmatprep.subr.mxu0 0.0
    %64 = vmatpush1.msra.mxu0 %v36
    %65 = vmatprep.subr.mxu0 0.0
    %66 = vmatpush1.msra.mxu0 %v37
    %67 = vmatprep.subr.mxu0 0.0
    %68 = vmatpush1.msra.mxu0 %v38
    %69 = vmatprep.subr.mxu0 0.0
    %70 = vmatpush1.msra.mxu0 %v39
    %71 = vmatprep.subr.mxu0 0.0
    %72 = vmatpush1.msra.mxu0 %v40
    %73 = vmatprep.subr.mxu0 0.0
    %74 = vmatpush1.msra.mxu0 0.0
    %75 = vmatprep.subr.mxu0 0.0
    %76 = vmatpush1.msra.mxu0 0.0
    %77 = vmatprep.subr.mxu0 0.0
    %78 = vmatpush1.msra.mxu0 0.0
    %79 = vmatprep.subr.mxu0 0.0
    %80 = vmatpush1.msra.mxu0 0.0
    %81 = vmatprep.subr.mxu0 0.0
    %82 = vmatpush1.msra.mxu0 0.0
    %83 = vmatprep.subr.mxu0 0.0
    %84 = vmatpush1.msra.mxu0 0.0
    %85 = vmatprep.subr.mxu0 0.0
    %86 = vmatpush1.msra.mxu0 0.0
    %87 = vmatprep.subr.mxu0 0.0
    %88 = vmatpush1.msra.mxu0 0.0
    %89 = vmatprep.subr.mxu0 0.0
    %90 = vmatpush1.msra.mxu0 0.0
    %91 = vmatprep.subr.mxu0 0.0
    %92 = vmatpush1.msra.mxu0 0.0
    %93 = vmatprep.subr.mxu0 0.0
    %94 = vmatpush1.msra.mxu0 0.0
    %95 = vmatprep.subr.mxu0 0.0
    %96 = vmatpush1.msra.mxu0 0.0
    %97 = vmatprep.subr.mxu0 0.0
    %98 = vmatpush1.msra.mxu0 0.0
    %99 = vmatprep.subr.mxu0 0.0
    %100 = vmatpush1.msra.mxu0 0.0
    %101 = vmatprep.subr.mxu0 0.0
    %102 = vmatpush1.msra.mxu0 0.0
    %103 = vmatprep.subr.mxu0 0.0
    %104 = vmatpush1.msra.mxu0 0.0
    %105 = vmatprep.mubr.f32.mxu0 0.0
    %106 = vmatmul.mubr.f32.gmra.mrb[0].mxu0 %v24
    %v107 = vpop.f32.mrb[0].mxu0
    %v108 = vadd.f32 0.0, %v107
    %v109 = vpop.f32.mrb[0].mxu0
    %110 = vdwg.mxu0
    %s111 = scalar_lea.vmem %s0, 128
    %v112 = vld [vmem:[%s111] sm:$0xff]
    %v113 = vld [vmem:[%s111 + $0x8] sm:$0xff]
    %v114 = vld [vmem:[%s111 + $0x10] sm:$0xff]
    %v115 = vld [vmem:[%s111 + $0x18] sm:$0xff]
    %v116 = vld [vmem:[%s111 + $0x20] sm:$0xff]
    %v117 = vld [vmem:[%s111 + $0x28] sm:$0xff]
    %v118 = vld [vmem:[%s111 + $0x30] sm:$0xff]
    %v119 = vld [vmem:[%s111 + $0x38] sm:$0xff]
    %v120 = vld [vmem:[%s111 + $0x40] sm:$0xff]
    %v121 = vld [vmem:[%s111 + $0x48] sm:$0xff]
    %v122 = vld [vmem:[%s111 + $0x50] sm:$0xff]
    %v123 = vld [vmem:[%s111 + $0x58] sm:$0xff]
    %v124 = vld [vmem:[%s111 + $0x60] sm:$0xff]
    %v125 = vld [vmem:[%s111 + $0x68] sm:$0xff]
    %v126 = vld [vmem:[%s111 + $0x70] sm:$0xff]
    %v127 = vld [vmem:[%s111 + $0x78] sm:$0xff]
    %128 = vmatprep.subr.mxu0 0.0
    %129 = vmatpush1.msra.mxu0 %v112
    %130 = vmatprep.subr.mxu0 0.0
    %131 = vmatpush1.msra.mxu0 %v113
    %132 = vmatprep.subr.mxu0 0.0
    %133 = vmatpush1.msra.mxu0 %v114
    %134 = vmatprep.subr.mxu0 0.0
    %135 = vmatpush1.msra.mxu0 %v115
    %136 = vmatprep.subr.mxu0 0.0
    %137 = vmatpush1.msra.mxu0 %v116
    %138 = vmatprep.subr.mxu0 0.0
    %139 = vmatpush1.msra.mxu0 %v117
    %140 = vmatprep.subr.mxu0 0.0
    %141 = vmatpush1.msra.mxu0 %v118
    %142 = vmatprep.subr.mxu0 0.0
    %143 = vmatpush1.msra.mxu0 %v119
    %144 = vmatprep.subr.mxu0 0.0
    %145 = vmatpush1.msra.mxu0 %v120
    %146 = vmatprep.subr.mxu0 0.0
    %147 = vmatpush1.msra.mxu0 %v121
    %148 = vmatprep.subr.mxu0 0.0
    %149 = vmatpush1.msra.mxu0 %v122
    %150 = vmatprep.subr.mxu0 0.0
    %151 = vmatpush1.msra.mxu0 %v123
    %152 = vmatprep.subr.mxu0 0.0
    %153 = vmatpush1.msra.mxu0 %v124
    %154 = vmatprep.subr.mxu0 0.0
    %155 = vmatpush1.msra.mxu0 %v125
    %156 = vmatprep.subr.mxu0 0.0
    %157 = vmatpush1.msra.mxu0 %v126
    %158 = vmatprep.subr.mxu0 0.0
    %159 = vmatpush1.msra.mxu0 %v127
    %160 = vmatprep.subr.mxu0 0.0
    %161 = vmatpush1.msra.mxu0 0.0
    %162 = vmatprep.subr.mxu0 0.0
    %163 = vmatpush1.msra.mxu0 0.0
    %164 = vmatprep.subr.mxu0 0.0
    %165 = vmatpush1.msra.mxu0 0.0
    %166 = vmatprep.subr.mxu0 0.0
    %167 = vmatpush1.msra.mxu0 0.0
    %168 = vmatprep.subr.mxu0 0.0
    %169 = vmatpush1.msra.mxu0 0.0
    %170 = vmatprep.subr.mxu0 0.0
    %171 = vmatpush1.msra.mxu0 0.0
    %172 = vmatprep.subr.mxu0 0.0
    %173 = vmatpush1.msra.mxu0 0.0
    %174 = vmatprep.subr.mxu0 0.0
    %175 = vmatpush1.msra.mxu0 0.0
    %176 = vmatprep.subr.mxu0 0.0
    %177 = vmatpush1.msra.mxu0 0.0
    %178 = vmatprep.subr.mxu0 0.0
    %179 = vmatpush1.msra.mxu0 0.0
    %180 = vmatprep.subr.mxu0 0.0
    %181 = vmatpush1.msra.mxu0 0.0
    %182 = vmatprep.subr.mxu0 0.0
    %183 = vmatpush1.msra.mxu0 0.0
    %184 = vmatprep.subr.mxu0 0.0
    %185 = vmatpush1.msra.mxu0 0.0
    %186 = vmatprep.subr.mxu0 0.0
    %187 = vmatpush1.msra.mxu0 0.0
    %188 = vmatprep.subr.mxu0 0.0
    %189 = vmatpush1.msra.mxu0 0.0
    %190 = vmatprep.subr.mxu0 0.0
    %191 = vmatpush1.msra.mxu0 0.0
    %192 = vmatprep.mubr.f32.mxu0 0.0
    %193 = vmatmul.mubr.f32.gmra.mrb[0].mxu0 %v24
    %v194 = vpop.f32.mrb[0].mxu0
    %v195 = vadd.f32 0.0, %v194
    %v196 = vpop.f32.mrb[0].mxu0
    %197 = vdwg.mxu0
    %vm198 = vcmask 519168
    %v199 = vsel %vm198, %v108, 0.0
    %v200 = vsel %vm198, %v195, 0.0
    %v201 = vadd.f32 %v199, %v200
    %202 = vadd.xlane.f32.xlu0 %v201
    %v203 = vpop.xlane.xlu0 %202
    %v204 = vmul.f32 %v203, 0.0078125
    %v205 = vsub.f32 %v108, %v204
    %v206 = vsub.f32 %v195, %v204
    %v207 = vmul.f32 %v205, %v205
    %v208 = vmul.f32 %v206, %v206
    %v209 = vsel %vm198, %v207, 0.0
    %v210 = vsel %vm198, %v208, 0.0
    %v211 = vadd.f32 %v209, %v210
    %212 = vadd.xlane.f32.xlu0 %v211
    %v213 = vpop.xlane.xlu0 %212
    %v214 = vmul.f32 %v213, 0.0078125
    %v215 = vadd.f32 %v214, 1e-05
    %v216 = vrsqrt.pop %v215
    %v217 = vld [vmem:[%s2] sm:$0xf]
    %v218 = vmul.f32 %v216, %v217
    %220 = vset.pattern.permute.xlu0 0
    %221 = vperm.xlu0 %220, %v218
    %v222 = vpop.permute.xlu0 %221
    %v224 = vmul.f32 %v205, %v222
    %v225 = vmul.f32 %v206, %v222
    %v226 = vld [vmem:[%s3] sm:$0xf]
    %228 = vset.pattern.permute.xlu0 0
    %229 = vperm.xlu0 %228, %v226
    %v230 = vpop.permute.xlu0 %229
    %v232 = vadd.f32 %v224, %v230
    %v233 = vadd.f32 %v225, %v230
    %v234 = vmax.f32 %v232, 0.0
    %v236 = vunpack.c.l.s4 1983009808
    %v237 = vunpack.c.0.s8 %v236
    %v238 = vlaneseq
    %v239 = vshrl.u32 %v238, 7
    %v240 = vsub.s32 %v237, %v239
    %v241 = vrot.slane %v234, %v240
    %v242 = vmax.f32 %v233, 0.0
    %v244 = vunpack.c.l.s4 1983009808
    %v245 = vunpack.c.0.s8 %v244
    %v246 = vlaneseq
    %v247 = vshrl.u32 %v246, 7
    %v248 = vsub.s32 %v245, %v247
    %v249 = vrot.slane %v242, %v248
    %v250 = vcombine.low %v241, %v249
    %v251 = vcombine.high %v241, %v249
    %v253 = vunpack.c.l.s4 1934713408
    %v254 = vunpack.c.0.s8 %v253
    %v255 = vlaneseq
    %v256 = vshrl.u32 %v255, 7
    %v257 = vsub.s32 %v254, %v256
    %v258 = vrot.slane %v250, %v257
    %v260 = vunpack.c.l.s4 1934713408
    %v261 = vunpack.c.0.s8 %v260
    %v262 = vlaneseq
    %v263 = vshrl.u32 %v262, 7
    %v264 = vsub.s32 %v261, %v263
    %v265 = vrot.slane %v251, %v264
    %v266 = vcombine.high %v258, 0.0
    %v267 = vcombine.high %v265, 0.0
    %269 = vrot.lane.b32.xlu0 %v266, 64
    %v270 = vpop.permute.xlu0 %269
    %273 = vrot.lane.b32.xlu0 %v267, 64
    %v274 = vpop.permute.xlu0 %273
    %vm276 = vcmask 523264
    %v277 = vsel %vm276, %v258, %v270
    %v278 = vsel %vm276, %v265, %v274
    %v279 = vld [vmem:[%s4] sm:$0xff]
    %v280 = vld [vmem:[%s4 + $0x8] sm:$0xff]
    %v281 = vld [vmem:[%s4 + $0x10] sm:$0xff]
    %v282 = vld [vmem:[%s4 + $0x18] sm:$0xff]
    %v283 = vld [vmem:[%s4 + $0x20] sm:$0xff]
    %v284 = vld [vmem:[%s4 + $0x28] sm:$0xff]
    %v285 = vld [vmem:[%s4 + $0x30] sm:$0xff]
    %v286 = vld [vmem:[%s4 + $0x38] sm:$0xff]
    %v287 = vld [vmem:[%s4 + $0x40] sm:$0xff]
    %v288 = vld [vmem:[%s4 + $0x48] sm:$0xff]
    %v289 = vld [vmem:[%s4 + $0x50] sm:$0xff]
    %v290 = vld [vmem:[%s4 + $0x58] sm:$0xff]
    %v291 = vld [vmem:[%s4 + $0x60] sm:$0xff]
    %v292 = vld [vmem:[%s4 + $0x68] sm:$0xff]
    %v293 = vld [vmem:[%s4 + $0x70] sm:$0xff]
    %v294 = vld [vmem:[%s4 + $0x78] sm:$0xff]
    %v295 = vld [vmem:[%s4 + $0x80] sm:$0xff]
    %v296 = vld [vmem:[%s4 + $0x88] sm:$0xff]
    %v297 = vld [vmem:[%s4 + $0x90] sm:$0xff]
    %v298 = vld [vmem:[%s4 + $0x98] sm:$0xff]
    %v299 = vld [vmem:[%s4 + $0xa0] sm:$0xff]
    %v300 = vld [vmem:[%s4 + $0xa8] sm:$0xff]
    %v301 = vld [vmem:[%s4 + $0xb0] sm:$0xff]
    %v302 = vld [vmem:[%s4 + $0xb8] sm:$0xff]
    %v303 = vld [vmem:[%s4 + $0xc0] sm:$0xff]
    %v304 = vld [vmem:[%s4 + $0xc8] sm:$0xff]
    %v305 = vld [vmem:[%s4 + $0xd0] sm:$0xff]
    %v306 = vld [vmem:[%s4 + $0xd8] sm:$0xff]
    %v307 = vld [vmem:[%s4 + $0xe0] sm:$0xff]
    %v308 = vld [vmem:[%s4 + $0xe8] sm:$0xff]
    %v309 = vld [vmem:[%s4 + $0xf0] sm:$0xff]
    %v310 = vld [vmem:[%s4 + $0xf8] sm:$0xff]
    %v311 = vld [vmem:[%s5] sm:$0x1]
    %v313 = vlaneseq
    %v314 = vshrl.u32 %v313, 7
    %v315 = vsub.s32 0, %v314
    %v316 = vrot.slane %v311, %v315
    %318 = vmatprep.subr.mxu0 0.0
    %319 = vmatpush1.msra.mxu0 %v279
    %320 = vmatprep.subr.mxu0 0.0
    %321 = vmatpush1.msra.mxu0 %v280
    %322 = vmatprep.subr.mxu0 0.0
    %323 = vmatpush1.msra.mxu0 %v281
    %324 = vmatprep.subr.mxu0 0.0
    %325 = vmatpush1.msra.mxu0 %v282
    %326 = vmatprep.subr.mxu0 0.0
    %327 = vmatpush1.msra.mxu0 %v283
    %328 = vmatprep.subr.mxu0 0.0
    %329 = vmatpush1.msra.mxu0 %v284
    %330 = vmatprep.subr.mxu0 0.0
    %331 = vmatpush1.msra.mxu0 %v285
    %332 = vmatprep.subr.mxu0 0.0
    %333 = vmatpush1.msra.mxu0 %v286
    %334 = vmatprep.subr.mxu0 0.0
    %335 = vmatpush1.msra.mxu0 %v287
    %336 = vmatprep.subr.mxu0 0.0
    %337 = vmatpush1.msra.mxu0 %v288
    %338 = vmatprep.subr.mxu0 0.0
    %339 = vmatpush1.msra.mxu0 %v289
    %340 = vmatprep.subr.mxu0 0.0
    %341 = vmatpush1.msra.mxu0 %v290
    %342 = vmatprep.subr.mxu0 0.0
    %343 = vmatpush1.msra.mxu0 %v291
    %344 = vmatprep.subr.mxu0 0.0
    %345 = vmatpush1.msra.mxu0 %v292
    %346 = vmatprep.subr.mxu0 0.0
    %347 = vmatpush1.msra.mxu0 %v293
    %348 = vmatprep.subr.mxu0 0.0
    %349 = vmatpush1.msra.mxu0 %v294
    %350 = vmatprep.subr.mxu0 0.0
    %351 = vmatpush1.msra.mxu0 %v295
    %352 = vmatprep.subr.mxu0 0.0
    %353 = vmatpush1.msra.mxu0 %v296
    %354 = vmatprep.subr.mxu0 0.0
    %355 = vmatpush1.msra.mxu0 %v297
    %356 = vmatprep.subr.mxu0 0.0
    %357 = vmatpush1.msra.mxu0 %v298
    %358 = vmatprep.subr.mxu0 0.0
    %359 = vmatpush1.msra.mxu0 %v299
    %360 = vmatprep.subr.mxu0 0.0
    %361 = vmatpush1.msra.mxu0 %v300
    %362 = vmatprep.subr.mxu0 0.0
    %363 = vmatpush1.msra.mxu0 %v301
    %364 = vmatprep.subr.mxu0 0.0
    %365 = vmatpush1.msra.mxu0 %v302
    %366 = vmatprep.subr.mxu0 0.0
    %367 = vmatpush1.msra.mxu0 %v303
    %368 = vmatprep.subr.mxu0 0.0
    %369 = vmatpush1.msra.mxu0 %v304
    %370 = vmatprep.subr.mxu0 0.0
    %371 = vmatpush1.msra.mxu0 %v305
    %372 = vmatprep.subr.mxu0 0.0
    %373 = vmatpush1.msra.mxu0 %v306
    %374 = vmatprep.subr.mxu0 0.0
    %375 = vmatpush1.msra.mxu0 %v307
    %376 = vmatprep.subr.mxu0 0.0
    %377 = vmatpush1.msra.mxu0 %v308
    %378 = vmatprep.subr.mxu0 0.0
    %379 = vmatpush1.msra.mxu0 %v309
    %380 = vmatprep.subr.mxu0 0.0
    %381 = vmatpush1.msra.mxu0 %v310
    %382 = vmatprep.mubr.f32.mxu0 %v278
    %383 = vmatmul.mubr.f32.gmra.mrb[0].mxu0 %v277
    %v384 = vpop.f32.mrb[0].mxu0
    %v385 = vadd.f32 %v316, %v384
    %v386 = vpop.f32.mrb[0].mxu0
    %387 = vdwg.mxu0
    %vm388 = vcmask 517120
    %v389 = vsel %vm388, %v385, -inf
    %390 = vmax.xlane.f32.xlu0 %v389
    %v391 = vpop.xlane.xlu0 %390
    %v392 = vsub.f32 %v385, %v391
    %v393 = vmul.f32 %v392, 1.442695
    %v394 = vpow.pop %v393
    %v395 = vsel %vm388, %v394, 0.0
    %396 = vadd.xlane.f32.xlu0 %v395
    %v397 = vpop.xlane.xlu0 %396
    %v398 = vrcp.pop %v397
    %v399 = vmul.f32 %v394, %v398
    %400 = vst.msk [vmem:[#allocation2] sm:$0x3] %vm388, %v399
    // Predicated region
    $region26: #{tpu_custom_call.1} parent=1 // pred_check
      _
    $region27: #{tpu_custom_call.1} parent=1 // pred_check_branch
      %402 = sbr.rel (0) target = $region29
    $region28: #{tpu_custom_call.1} parent=1 // pred_region
      %s404 = ssub.s32 32, 32
      %405 = vsyncadd [#allocation3], %s404
      %s407 = sshll.u32 [#allocation2], 4
      %s408 = int_to_ptr.vmem [resolvable:$true] %s407
      %410 = dma.vmem_to_hbm [thread:$0]  %s408, 32, %s6, [#allocation3]
    $region29: #{tpu_custom_call.1} parent=1 // pred_fallthru
      _
    // Predicated region
    $region30: #{tpu_custom_call.1} parent=1 // pred_check
      _
    $region31: #{tpu_custom_call.1} parent=1 // pred_check_branch
      %412 = sbr.rel (0) target = $region33
    $region32: #{tpu_custom_call.1} parent=1 // pred_region
      %413 = dma.done [#allocation3], 32
    $region33: #{tpu_custom_call.1} parent=1 // pred_fallthru
      _
    %414 = vsyncpa [#allocation3], 1

</llo_original>
